<compile_context>
chip_gen: v7x
topology: tpu7x:2x2x1
jax: 0.10.0
libtpu: 0.0.40
codegen_flags: <defaults>
</compile_context>

<pallas_src>
import functools

import jax
import jax.numpy as jnp
from jax.experimental import pallas as pl
from jax.experimental.pallas import tpu as pltpu


def _round_up(v, m):
    return (v + m - 1) // m * m


def _ln_tanh(h, gamma, beta):
    # Fused one-pass LayerNorm + Tanh.  Variance is clamped at 0 so the
    # E[h^2]-E[h]^2 form can never go (slightly) negative under f32
    # cancellation and NaN the rsqrt.
    mu = jnp.mean(h, axis=-1, keepdims=True)
    ms = jnp.mean(h * h, axis=-1, keepdims=True)
    var = jnp.maximum(ms - mu * mu, 0.0)
    hn = (h - mu) * jax.lax.rsqrt(var + 1e-5)
    return jnp.tanh(hn * gamma + beta)


# --------------------------------------------------------------------------
# Pallas kernel: one row-block of nodes per grid step; full MLP in VMEM.
# --------------------------------------------------------------------------
def _node_mean_kernel(nb_layers, compute_dtype, inp_ref, *refs):
    out_ref = refs[-1]
    p = refs[:-1]
    cdt = compute_dtype

    inp = inp_ref[...]                      # [TN, 2D] = [msg || x], compute dtype

    # First layer: single K=2D matmul.  The mean term is pre-folded into the
    # bias (row 0 of the packed [3,H] vector), so no per-step rank-1 matmul.
    h = jnp.dot(inp, p[0][...], preferred_element_type=jnp.float32)

    idx = 1
    if nb_layers > 1:
        vec = p[idx][...]                   # [3, H] = (bias_eff, gamma, beta)
        idx += 1
        h = _ln_tanh(h + vec[0:1, :], vec[1:2, :], vec[2:3, :])
        for _ in range(nb_layers - 2):
            w = p[idx][...]
            vec = p[idx + 1][...]
            idx += 2
            h = jnp.dot(h.astype(cdt), w, preferred_element_type=jnp.float32)
            h = _ln_tanh(h + vec[0:1, :], vec[1:2, :], vec[2:3, :])
        # Final layer: Linear only (output_activation=None -> no LN, no act).
        w = p[idx][...]
        b = p[idx + 1][...]
        h = jnp.dot(h.astype(cdt), w, preferred_element_type=jnp.float32) + b
    else:
        h = h + p[idx][...]                 # bias (with mean term folded in)

    out_ref[...] = h.astype(out_ref.dtype)


# --------------------------------------------------------------------------
# Wrapper: sparse aggregation glue + row-blocked pallas_call.
# --------------------------------------------------------------------------
def node_mean_network_pallas(x, e, edge_index, params, nb_layers, output_dim,
                             compute_dtype=jnp.float32):
    """x: [N, D] f32, e: [E] f32, edge_index: [2, E] i32 -> [N, output_dim] f32."""
    n, d = x.shape
    start, end = edge_index[0], edge_index[1]

    # ---- XLA glue (O(E*D), tiny): fused sparse aggregation + node mean. ----
    # TODO(synk): the data-dependent scatter_add over edge_index has no clean
    # TPU Pallas mapping; it stays in the wrapper so the kernel never touches
    # a dense [N,N] adjacency.  Both directed scatters are fused into one
    # .at[].add pass over HBM.
    dst = jnp.concatenate([end, start], axis=0)
    src = jnp.concatenate([start, end], axis=0)
    vals = jnp.concatenate([e, e], axis=0)[:, None] * x[src]
    messages_in = jnp.zeros_like(x).at[dst].add(vals)
    node_mean = jnp.mean(messages_in + x, axis=0, keepdims=True)         # [1, D]

    # ---- Row-block tiling ---------------------------------------------------
    # Large tiles to amortize per-step overhead, but >= 2 grid steps so the
    # "parallel" axis shards across both v7x TensorCores.  Rows aligned to the
    # compute dtype's sublane packing (8 for 4-byte, 16 for 2-byte dtypes).
    row_align = max(8, 32 // jnp.dtype(compute_dtype).itemsize)
    max_tn = 1024
    num_steps = max(2, pl.cdiv(n, max_tn))
    tn = max(row_align, _round_up(pl.cdiv(n, num_steps), row_align))
    n_pad = _round_up(n, tn)
    grid = (n_pad // tn,)

    # Lane-dense output width (unmasked vst stores); sliced back at the end.
    # (On v5e with tiny output_dim a masked unpadded store may be preferable.)
    out_pad = _round_up(output_dim, 128)

    w_dt = compute_dtype
    # Single streamed input [msg || x]: one pad+cast pass, one DMA stream.
    inp = jnp.concatenate([messages_in, x], axis=-1)                     # [N, 2D]
    inp = jnp.pad(inp, ((0, n_pad - n), (0, 0))).astype(w_dt)

    # ---- Parameter packing --------------------------------------------------
    #   * first-layer weight restricted to its [2D, H] (msg, x) slice;
    #   * mean term folded into the bias: b_eff = b1 + node_mean @ W1[2D:];
    #   * per hidden layer, (bias, gamma, beta) fused into one [3, H] ref;
    #   * final weight/bias zero-padded to the lane-dense output width.
    flat_params = []
    if nb_layers > 1:
        w1, b1, g1, bt1 = params[0]
        b_eff = b1 + node_mean @ w1[2 * d:]                              # [1, H]
        flat_params += [
            w1[:2 * d].astype(w_dt),                                     # [2D, H]
            jnp.concatenate([b_eff, g1, bt1], axis=0),                   # [3, H]
        ]
        for i in range(1, nb_layers - 1):
            w, b, g, bt = params[i]
            flat_params += [w.astype(w_dt), jnp.concatenate([b, g, bt], axis=0)]
        w_last, b_last = params[-1]
        flat_params += [
            jnp.pad(w_last, ((0, 0), (0, out_pad - output_dim))).astype(w_dt),
            jnp.pad(b_last, ((0, 0), (0, out_pad - output_dim))),
        ]
    else:
        w1, b1 = params[0]
        b_eff = b1 + node_mean @ w1[2 * d:]
        flat_params += [
            jnp.pad(w1[:2 * d], ((0, 0), (0, out_pad - output_dim))).astype(w_dt),
            jnp.pad(b_eff, ((0, 0), (0, out_pad - output_dim))),
        ]

    kernel = functools.partial(_node_mean_kernel, nb_layers, compute_dtype)

    row_spec = pl.BlockSpec((tn, 2 * d), lambda i: (i, 0))
    const_specs = [pl.BlockSpec(p.shape, lambda i: (0, 0)) for p in flat_params]

    out = pl.pallas_call(
        kernel,
        out_shape=jax.ShapeDtypeStruct((n_pad, out_pad), jnp.float32),
        grid=grid,
        in_specs=[row_spec] + const_specs,
        out_specs=pl.BlockSpec((tn, out_pad), lambda i: (i, 0)),
        compiler_params=pltpu.CompilerParams(dimension_semantics=("parallel",)),
    )(inp, *flat_params)

    return out[:n, :output_dim]


# --------------------------------------------------------------------------
# Deterministic parameter init (matches make_mlp(input_dim*3, [out]*nb_layers,
# hidden_activation='Tanh', output_activation=None, layer_norm=True))
# --------------------------------------------------------------------------
def init_params(key, input_dim, output_dim, nb_layers):
    sizes = [input_dim * 3] + [output_dim] * nb_layers
    params = []
    for i in range(nb_layers):
        fan_in, fan_out = sizes[i], sizes[i + 1]
        key, kw, kb = jax.random.split(key, 3)
        bound = 1.0 / jnp.sqrt(jnp.float32(fan_in))
        w = jax.random.uniform(kw, (fan_in, fan_out), jnp.float32, -bound, bound)
        b = jax.random.uniform(kb, (1, fan_out), jnp.float32, -bound, bound)
        if i < nb_layers - 1:
            g = jnp.ones((1, fan_out), jnp.float32)       # LayerNorm weight
            beta = jnp.zeros((1, fan_out), jnp.float32)   # LayerNorm bias
            params.append((w, b, g, beta))
        else:
            params.append((w, b))
    return params


# --------------------------------------------------------------------------
# Pure-JAX reference (mirrors the PyTorch forward exactly)
# --------------------------------------------------------------------------
def reference_forward(x, e, edge_index, params, nb_layers):
    start, end = edge_index[0], edge_index[1]
    messages_in = (
        jnp.zeros_like(x).at[end].add(e[:, None] * x[start])
        + jnp.zeros_like(x).at[start].add(e[:, None] * x[end])
    )
    combined = messages_in + x
    node_mean = jnp.mean(combined, axis=0)
    h = jnp.concatenate(
        [messages_in, x, jnp.broadcast_to(node_mean[None, :], x.shape)], axis=-1
    )
    for i in range(nb_layers - 1):
        w, b, g, beta = params[i]
        h = h @ w + b
        mu = jnp.mean(h, axis=-1, keepdims=True)
        var = jnp.mean((h - mu) ** 2, axis=-1, keepdims=True)
        h = (h - mu) / jnp.sqrt(var + 1e-5)
        h = h * g + beta
        h = jnp.tanh(h)
    w, b = params[-1]
    return h @ w + b


def _run_case(key, n, input_dim, output_dim, nb_layers, n_edges,
              compute_dtype, atol, rtol):
    kx, ke, ks, kd, kp = jax.random.split(key, 5)
    x = jax.random.normal(kx, (n, input_dim), jnp.float32)
    e = jax.random.uniform(ke, (n_edges,), jnp.float32)
    start = jax.random.randint(ks, (n_edges,), 0, n, jnp.int32)
    end = jax.random.randint(kd, (n_edges,), 0, n, jnp.int32)
    edge_index = jnp.stack([start, end], axis=0)

    params = init_params(kp, input_dim, output_dim, nb_layers)
    ref = reference_forward(x, e, edge_index, params, nb_layers)

    out = node_mean_network_pallas(
        x, e, edge_index, params, nb_layers, output_dim,
        compute_dtype=compute_dtype)
    out = jax.block_until_ready(out)
    assert out.shape == (n, output_dim)
    assert bool(jnp.all(jnp.isfinite(out)))
    err = float(jnp.max(jnp.abs(out - ref)))
    assert jnp.allclose(out, ref, atol=atol, rtol=rtol), err


if __name__ == "__main__":
    key = jax.random.PRNGKey(0)
    k1, k2, k3, k4 = jax.random.split(key, 4)

    # Primary toy case: f32 operands, tight check against the reference.
    _run_case(k1, 16, 8, 32, 3, 40, jnp.float32, atol=1e-3, rtol=1e-3)

    # bf16 MXU-operand path (f32 accumulation, f32 LN/Tanh between layers).
    _run_case(k2, 16, 8, 32, 3, 40, jnp.bfloat16, atol=0.15, rtol=0.0)

    # Multi-step grid with row padding (exercises tn / n_pad / grid logic).
    _run_case(k3, 300, 8, 32, 3, 900, jnp.float32, atol=1e-3, rtol=1e-3)

    # Single-layer network path (Linear only, mean folded into the bias).
    _run_case(k4, 16, 8, 32, 1, 40, jnp.float32, atol=1e-3, rtol=1e-3)

    print("KERNEL_OK")
</pallas_src>

<mosaic_0001>
module attributes {stable_mosaic.version = 11 : i64} {
  func.func @_node_mean_kernel(%arg0: i32, %arg1: memref<8x16xf32, #tpu.memory_space<vmem>>, %arg2: memref<16x32xf32, #tpu.memory_space<vmem>>, %arg3: memref<3x32xf32, #tpu.memory_space<vmem>>, %arg4: memref<32x32xf32, #tpu.memory_space<vmem>>, %arg5: memref<3x32xf32, #tpu.memory_space<vmem>>, %arg6: memref<32x128xf32, #tpu.memory_space<vmem>>, %arg7: memref<1x128xf32, #tpu.memory_space<vmem>>, %arg8: memref<8x128xf32, #tpu.memory_space<vmem>>) attributes {dimension_semantics = [#tpu.dimension_semantics<parallel>], iteration_bounds = array<i64: 2>, scalar_prefetch = 0 : i64, scratch_operands = 0 : i64, tpu.core_type = #tpu.core_type<tc>, window_params = [{transform_indices = @transform_0, window_bounds = array<i64: 8, 16>}, {pipeline_mode = #tpu.pipeline_mode<synchronous>, transform_indices = @transform_1, window_bounds = array<i64: 16, 32>}, {pipeline_mode = #tpu.pipeline_mode<synchronous>, transform_indices = @transform_2, window_bounds = array<i64: 3, 32>}, {pipeline_mode = #tpu.pipeline_mode<synchronous>, transform_indices = @transform_3, window_bounds = array<i64: 32, 32>}, {pipeline_mode = #tpu.pipeline_mode<synchronous>, transform_indices = @transform_4, window_bounds = array<i64: 3, 32>}, {pipeline_mode = #tpu.pipeline_mode<synchronous>, transform_indices = @transform_5, window_bounds = array<i64: 32, 128>}, {pipeline_mode = #tpu.pipeline_mode<synchronous>, transform_indices = @transform_6, window_bounds = array<i64: 1, 128>}, {transform_indices = @transform_7, window_bounds = array<i64: 8, 128>}]} {
    %c0 = arith.constant 0 : index
    %c0_0 = arith.constant 0 : index
    %0 = vector.load %arg1[%c0, %c0_0] : memref<8x16xf32, #tpu.memory_space<vmem>>, vector<8x16xf32>
    %c0_1 = arith.constant 0 : index
    %c0_2 = arith.constant 0 : index
    %1 = vector.load %arg2[%c0_1, %c0_2] : memref<16x32xf32, #tpu.memory_space<vmem>>, vector<16x32xf32>
    %cst = arith.constant dense<0.000000e+00> : vector<8x32xf32>
    %2 = tpu.matmul %0, %1, %cst {dimension_numbers = #tpu.dot_dimension_numbers<[1], [0], [0], [1], [0, 0, 1, 1], [], []>} : vector<8x16xf32>, vector<16x32xf32>, vector<8x32xf32> -> vector<8x32xf32>
    %c0_3 = arith.constant 0 : index
    %c0_4 = arith.constant 0 : index
    %3 = vector.load %arg3[%c0_3, %c0_4] : memref<3x32xf32, #tpu.memory_space<vmem>>, vector<3x32xf32>
    %4 = vector.extract_strided_slice %3 {offsets = [0, 0], sizes = [1, 32], strides = [1, 1]} : vector<3x32xf32> to vector<1x32xf32>
    %5 = vector.broadcast %4 : vector<1x32xf32> to vector<8x32xf32>
    %6 = arith.addf %2, %5 : vector<8x32xf32>
    %7 = vector.extract_strided_slice %3 {offsets = [1, 0], sizes = [1, 32], strides = [1, 1]} : vector<3x32xf32> to vector<1x32xf32>
    %8 = vector.extract_strided_slice %3 {offsets = [2, 0], sizes = [1, 32], strides = [1, 1]} : vector<3x32xf32> to vector<1x32xf32>
    %cst_5 = arith.constant dense<0.000000e+00> : vector<8xf32>
    %9 = vector.multi_reduction <add>, %6, %cst_5 [1] : vector<8x32xf32> to vector<8xf32>
    %10 = vector.shape_cast %9 : vector<8xf32> to vector<8x1xf32>
    %cst_6 = arith.constant 3.200000e+01 : f32
    %11 = vector.broadcast %cst_6 : f32 to vector<8x1xf32>
    %12 = arith.divf %10, %11 : vector<8x1xf32>
    %13 = arith.mulf %6, %6 : vector<8x32xf32>
    %cst_7 = arith.constant dense<0.000000e+00> : vector<8xf32>
    %14 = vector.multi_reduction <add>, %13, %cst_7 [1] : vector<8x32xf32> to vector<8xf32>
    %15 = vector.shape_cast %14 : vector<8xf32> to vector<8x1xf32>
    %cst_8 = arith.constant 3.200000e+01 : f32
    %16 = vector.broadcast %cst_8 : f32 to vector<8x1xf32>
    %17 = arith.divf %15, %16 : vector<8x1xf32>
    %18 = arith.mulf %12, %12 : vector<8x1xf32>
    %19 = arith.subf %17, %18 : vector<8x1xf32>
    %cst_9 = arith.constant 0.000000e+00 : f32
    %20 = vector.broadcast %cst_9 : f32 to vector<8x1xf32>
    %21 = arith.maximumf %19, %20 : vector<8x1xf32>
    %22 = vector.broadcast %12 : vector<8x1xf32> to vector<8x32xf32>
    %23 = arith.subf %6, %22 : vector<8x32xf32>
    %cst_10 = arith.constant 9.99999974E-6 : f32
    %24 = vector.broadcast %cst_10 : f32 to vector<8x1xf32>
    %25 = arith.addf %21, %24 : vector<8x1xf32>
    %26 = math.rsqrt %25 : vector<8x1xf32>
    %27 = vector.broadcast %26 : vector<8x1xf32> to vector<8x32xf32>
    %28 = arith.mulf %23, %27 : vector<8x32xf32>
    %29 = vector.broadcast %7 : vector<1x32xf32> to vector<8x32xf32>
    %30 = arith.mulf %28, %29 : vector<8x32xf32>
    %31 = vector.broadcast %8 : vector<1x32xf32> to vector<8x32xf32>
    %32 = arith.addf %30, %31 : vector<8x32xf32>
    %33 = math.tanh %32 : vector<8x32xf32>
    %c0_11 = arith.constant 0 : index
    %c0_12 = arith.constant 0 : index
    %34 = vector.load %arg4[%c0_11, %c0_12] : memref<32x32xf32, #tpu.memory_space<vmem>>, vector<32x32xf32>
    %c0_13 = arith.constant 0 : index
    %c0_14 = arith.constant 0 : index
    %35 = vector.load %arg5[%c0_13, %c0_14] : memref<3x32xf32, #tpu.memory_space<vmem>>, vector<3x32xf32>
    %cst_15 = arith.constant dense<0.000000e+00> : vector<8x32xf32>
    %36 = tpu.matmul %33, %34, %cst_15 {dimension_numbers = #tpu.dot_dimension_numbers<[1], [0], [0], [1], [0, 0, 1, 1], [], []>} : vector<8x32xf32>, vector<32x32xf32>, vector<8x32xf32> -> vector<8x32xf32>
    %37 = vector.extract_strided_slice %35 {offsets = [0, 0], sizes = [1, 32], strides = [1, 1]} : vector<3x32xf32> to vector<1x32xf32>
    %38 = vector.broadcast %37 : vector<1x32xf32> to vector<8x32xf32>
    %39 = arith.addf %36, %38 : vector<8x32xf32>
    %40 = vector.extract_strided_slice %35 {offsets = [1, 0], sizes = [1, 32], strides = [1, 1]} : vector<3x32xf32> to vector<1x32xf32>
    %41 = vector.extract_strided_slice %35 {offsets = [2, 0], sizes = [1, 32], strides = [1, 1]} : vector<3x32xf32> to vector<1x32xf32>
    %cst_16 = arith.constant dense<0.000000e+00> : vector<8xf32>
    %42 = vector.multi_reduction <add>, %39, %cst_16 [1] : vector<8x32xf32> to vector<8xf32>
    %43 = vector.shape_cast %42 : vector<8xf32> to vector<8x1xf32>
    %cst_17 = arith.constant 3.200000e+01 : f32
    %44 = vector.broadcast %cst_17 : f32 to vector<8x1xf32>
    %45 = arith.divf %43, %44 : vector<8x1xf32>
    %46 = arith.mulf %39, %39 : vector<8x32xf32>
    %cst_18 = arith.constant dense<0.000000e+00> : vector<8xf32>
    %47 = vector.multi_reduction <add>, %46, %cst_18 [1] : vector<8x32xf32> to vector<8xf32>
    %48 = vector.shape_cast %47 : vector<8xf32> to vector<8x1xf32>
    %cst_19 = arith.constant 3.200000e+01 : f32
    %49 = vector.broadcast %cst_19 : f32 to vector<8x1xf32>
    %50 = arith.divf %48, %49 : vector<8x1xf32>
    %51 = arith.mulf %45, %45 : vector<8x1xf32>
    %52 = arith.subf %50, %51 : vector<8x1xf32>
    %cst_20 = arith.constant 0.000000e+00 : f32
    %53 = vector.broadcast %cst_20 : f32 to vector<8x1xf32>
    %54 = arith.maximumf %52, %53 : vector<8x1xf32>
    %55 = vector.broadcast %45 : vector<8x1xf32> to vector<8x32xf32>
    %56 = arith.subf %39, %55 : vector<8x32xf32>
    %cst_21 = arith.constant 9.99999974E-6 : f32
    %57 = vector.broadcast %cst_21 : f32 to vector<8x1xf32>
    %58 = arith.addf %54, %57 : vector<8x1xf32>
    %59 = math.rsqrt %58 : vector<8x1xf32>
    %60 = vector.broadcast %59 : vector<8x1xf32> to vector<8x32xf32>
    %61 = arith.mulf %56, %60 : vector<8x32xf32>
    %62 = vector.broadcast %40 : vector<1x32xf32> to vector<8x32xf32>
    %63 = arith.mulf %61, %62 : vector<8x32xf32>
    %64 = vector.broadcast %41 : vector<1x32xf32> to vector<8x32xf32>
    %65 = arith.addf %63, %64 : vector<8x32xf32>
    %66 = math.tanh %65 : vector<8x32xf32>
    %c0_22 = arith.constant 0 : index
    %c0_23 = arith.constant 0 : index
    %67 = vector.load %arg6[%c0_22, %c0_23] : memref<32x128xf32, #tpu.memory_space<vmem>>, vector<32x128xf32>
    %c0_24 = arith.constant 0 : index
    %c0_25 = arith.constant 0 : index
    %68 = vector.load %arg7[%c0_24, %c0_25] : memref<1x128xf32, #tpu.memory_space<vmem>>, vector<1x128xf32>
    %cst_26 = arith.constant dense<0.000000e+00> : vector<8x128xf32>
    %69 = tpu.matmul %66, %67, %cst_26 {dimension_numbers = #tpu.dot_dimension_numbers<[1], [0], [0], [1], [0, 0, 1, 1], [], []>} : vector<8x32xf32>, vector<32x128xf32>, vector<8x128xf32> -> vector<8x128xf32>
    %70 = vector.broadcast %68 : vector<1x128xf32> to vector<8x128xf32>
    %71 = arith.addf %69, %70 : vector<8x128xf32>
    %c0_27 = arith.constant 0 : index
    %c0_28 = arith.constant 0 : index
    %72 = vector.load %arg8[%c0_27, %c0_28] : memref<8x128xf32, #tpu.memory_space<vmem>>, vector<8x128xf32>
    tpu.vector_store %arg8[%c0_27, %c0_28], %71 {strides = array<i32>} : memref<8x128xf32, #tpu.memory_space<vmem>>, vector<8x128xf32>,
    return
  }
  func.func @transform_0(%arg0: i32) -> (i32, i32) {
    %c0_i32 = arith.constant 0 : i32
    %c0_i32_0 = arith.constant 0 : i32
    return %arg0, %c0_i32 : i32, i32
  }
  func.func @transform_1(%arg0: i32) -> (i32, i32) {
    %c0_i32 = arith.constant 0 : i32
    %c0_i32_0 = arith.constant 0 : i32
    %c0_i32_1 = arith.constant 0 : i32
    return %c0_i32, %c0_i32_0 : i32, i32
  }
  func.func @transform_2(%arg0: i32) -> (i32, i32) {
    %c0_i32 = arith.constant 0 : i32
    %c0_i32_0 = arith.constant 0 : i32
    %c0_i32_1 = arith.constant 0 : i32
    return %c0_i32, %c0_i32_0 : i32, i32
  }
  func.func @transform_3(%arg0: i32) -> (i32, i32) {
    %c0_i32 = arith.constant 0 : i32
    %c0_i32_0 = arith.constant 0 : i32
    %c0_i32_1 = arith.constant 0 : i32
    return %c0_i32, %c0_i32_0 : i32, i32
  }
  func.func @transform_4(%arg0: i32) -> (i32, i32) {
    %c0_i32 = arith.constant 0 : i32
    %c0_i32_0 = arith.constant 0 : i32
    %c0_i32_1 = arith.constant 0 : i32
    return %c0_i32, %c0_i32_0 : i32, i32
  }
  func.func @transform_5(%arg0: i32) -> (i32, i32) {
    %c0_i32 = arith.constant 0 : i32
    %c0_i32_0 = arith.constant 0 : i32
    %c0_i32_1 = arith.constant 0 : i32
    return %c0_i32, %c0_i32_0 : i32, i32
  }
  func.func @transform_6(%arg0: i32) -> (i32, i32) {
    %c0_i32 = arith.constant 0 : i32
    %c0_i32_0 = arith.constant 0 : i32
    %c0_i32_1 = arith.constant 0 : i32
    return %c0_i32, %c0_i32_0 : i32, i32
  }
  func.func @transform_7(%arg0: i32) -> (i32, i32) {
    %c0_i32 = arith.constant 0 : i32
    %c0_i32_0 = arith.constant 0 : i32
    return %arg0, %c0_i32 : i32, i32
  }
}

</mosaic_0001>

<llo_original>
// kernel: tpu_custom_call.1
$region0: #{tpu_custom_call.1}
  #allocation0 [shape = 'u32[]', space=smem, size = 0x4, offset = 0x4, fixed_abs, tag = 'smem constant byte address 0x4 - core index']
  #allocation1 [shape = 'u32[144,128]{1,0:T(1,128)}', space=vmem, size = 0x12000, scoped, tag = 'internal scratch']
  %s0 = inlined_call_operand.hbm [shape: f32[16,16], index: 0, kind: input, shape index: {}]
  %s1 = inlined_call_operand.hbm [shape: f32[16,32], index: 1, kind: input, shape index: {}]
  %s2 = inlined_call_operand.vmem [shape: f32[3,32], index: 2, kind: input, shape index: {}]
  %s3 = inlined_call_operand.hbm [shape: f32[32,32], index: 3, kind: input, shape index: {}]
  %s4 = inlined_call_operand.vmem [shape: f32[3,32], index: 4, kind: input, shape index: {}]
  %s5 = inlined_call_operand.hbm [shape: f32[32,128], index: 5, kind: input, shape index: {}]
  %s6 = inlined_call_operand.vmem [shape: f32[1,128], index: 6, kind: input, shape index: {}]
  %s7 = inlined_call_operand.hbm [shape: f32[16,128], index: 7, kind: output, shape index: {}]
  %s8 = sld [smem:[#allocation0]]
  $region77: #{tpu_custom_call.1} parent=0
    _
  %s10 = ssub.s32 1, %s8
  %s11 = scalar_select 0, %s10, %s8
  $region1: #{tpu_custom_call.1} parent=0
    #allocation2 [shape = 'u8[8192]{0}', space=vmem, size = 0x2000, scoped, tag = 'input window, operand 0']
    #allocation3 [shape = 's32[2]{0}', space=sflag, size = 0x8, scoped, tag = 'scoped memory for tpu_custom_call.1']
    #allocation4 [shape = 's32[2]{0}', space=sflag, size = 0x8, scoped, tag = 'scoped memory for tpu_custom_call.1']
    #allocation5 [shape = 'u8[8192]{0}', space=vmem, size = 0x2000, scoped, tag = 'input window, operand 1, single buffered']
    #allocation6 [shape = 's32[1]{0}', space=sflag, size = 0x4, scoped, tag = 'scoped memory for tpu_custom_call.1']
    #allocation7 [shape = 'u8[16384]{0}', space=vmem, size = 0x4000, scoped, tag = 'input window, operand 3, single buffered']
    #allocation8 [shape = 'u8[16384]{0}', space=vmem, size = 0x4000, scoped, tag = 'input window, operand 5, single buffered']
    #allocation9 [shape = 's32[1]{0}', space=sflag, size = 0x4, scoped, tag = 'scoped memory for tpu_custom_call.1']
    #allocation10 [shape = 'u8[8192]{0}', space=vmem, size = 0x2000, scoped, tag = 'output window, operand 0']
    %12 = vsyncpa [#allocation3], 0
    %s13 = scalar_lea.sflag [#allocation3], 1
    %14 = vsyncpa %s13, 0
    %15 = vsyncpa [#allocation6], 0
    %16 = vsyncpa [#allocation9], 0
    %17 = vsyncpa [#allocation4], 0
    %s18 = scalar_lea.sflag [#allocation4], 1
    %19 = vsyncpa %s18, 0
    loop: start=0, step=1, limit=4
    $region2: #{tpu_custom_call.1} parent=1 // loop_pre_header
      _
    $region3: #{tpu_custom_call.1} parent=1 // loop_header
      %s21 = sphi 0, %s25
      %p22 = scmp.ge.s32.totalorder %s21, 4
      %s31 = sphi 0, %s33
      %s34 = sphi 0, %s31
      %s35 = sphi 0, %s34
      %s51 = sphi 0, %s35
      %s55 = sphi 0, %s55
      %s57 = sphi 0, %s55
      %s58 = sphi 0, %s57
      %s72 = sphi 0, %s58
      %s76 = sphi 0, %s76
      %s78 = sphi 0, %s76
      %s79 = sphi 0, %s78
      %s93 = sphi 0, %s79
      %s97 = sphi 0, %s97
      %s99 = sphi 0, %s97
      %s100 = sphi 0, %s99
      %s114 = sphi 0, %s100
      %s118 = sphi 0, %s118
      %s120 = sphi 0, %s118
      %s121 = sphi 0, %s120
      %s135 = sphi 0, %s121
      %s139 = sphi 0, %s139
      %s141 = sphi 0, %s139
      %s142 = sphi 0, %s141
      %s156 = sphi 0, %s142
      %s160 = sphi 0, %s160
      %s162 = sphi 0, %s160
      %s163 = sphi 0, %s162
      %s177 = sphi 0, %s163
      %s183 = sphi 0, %s185
      %s186 = sphi 0, %s183
      %s187 = sphi 0, %s186
      %s203 = sphi 0, %s187
    $region4: #{tpu_custom_call.1} parent=1 // loop_header_branch
      %24 = sbr.rel (%p22) target = $region8
    $region5: #{tpu_custom_call.1} parent=1 // loop_body
      %s26 = ssub.s32 %s21, 1
      %s27 = ssub.s32 %s21, 2
      %s28 = sadd.s32 %s21, 1
      %s29 = ssub.s32 %s21, %s28
      %p30 = scmp.eq.s32.totalorder %s29, 0
      %s32 = sadd.s32 %s31, 1
      %s33 = scalar_select %p30, %s31, %s32
      %p36 = pneg %p30
      %p37 = scmp.eq.s32.totalorder %s21, 1
      %p38 = por %p36, %p37
      %p39 = scmp.ne.s32.totalorder %s31, %s34
      %p40 = scmp.eq.s32.totalorder %s21, 0
      %p41 = por %p39, %p40
      %p42 = scmp.ne.s32.totalorder %s31, %s34
      %p43 = scmp.eq.s32.totalorder %s26, 1
      %p44 = por %p42, %p43
      %p45 = scmp.ne.s32.totalorder %s34, %s35
      %p46 = scmp.eq.s32.totalorder %s26, 0
      %p47 = por %p45, %p46
      %p48 = scmp.ne.s32.totalorder %s34, %s35
      %p49 = scmp.eq.s32.totalorder %s27, 1
      %p50 = por %p48, %p49
      %p52 = scmp.ne.s32.totalorder %s35, %s51
      %p53 = scmp.eq.s32.totalorder %s27, 0
      %p54 = por %p52, %p53
      %s56 = sadd.s32 %s55, 1
      %p59 = scmp.eq.s32.totalorder %s21, 1
      %p60 = scmp.ne.s32.totalorder %s55, %s57
      %p61 = scmp.eq.s32.totalorder %s21, 0
      %p62 = por %p60, %p61
      %p63 = scmp.ne.s32.totalorder %s55, %s57
      %p64 = scmp.eq.s32.totalorder %s26, 1
      %p65 = por %p63, %p64
      %p66 = scmp.ne.s32.totalorder %s57, %s58
      %p67 = scmp.eq.s32.totalorder %s26, 0
      %p68 = por %p66, %p67
      %p69 = scmp.ne.s32.totalorder %s57, %s58
      %p70 = scmp.eq.s32.totalorder %s27, 1
      %p71 = por %p69, %p70
      %p73 = scmp.ne.s32.totalorder %s58, %s72
      %p74 = scmp.eq.s32.totalorder %s27, 0
      %p75 = por %p73, %p74
      %s77 = sadd.s32 %s76, 1
      %p80 = scmp.eq.s32.totalorder %s21, 1
      %p81 = scmp.ne.s32.totalorder %s76, %s78
      %p82 = scmp.eq.s32.totalorder %s21, 0
      %p83 = por %p81, %p82
      %p84 = scmp.ne.s32.totalorder %s76, %s78
      %p85 = scmp.eq.s32.totalorder %s26, 1
      %p86 = por %p84, %p85
      %p87 = scmp.ne.s32.totalorder %s78, %s79
      %p88 = scmp.eq.s32.totalorder %s26, 0
      %p89 = por %p87, %p88
      %p90 = scmp.ne.s32.totalorder %s78, %s79
      %p91 = scmp.eq.s32.totalorder %s27, 1
      %p92 = por %p90, %p91
      %p94 = scmp.ne.s32.totalorder %s79, %s93
      %p95 = scmp.eq.s32.totalorder %s27, 0
      %p96 = por %p94, %p95
      %s98 = sadd.s32 %s97, 1
      %p101 = scmp.eq.s32.totalorder %s21, 1
      %p102 = scmp.ne.s32.totalorder %s97, %s99
      %p103 = scmp.eq.s32.totalorder %s21, 0
      %p104 = por %p102, %p103
      %p105 = scmp.ne.s32.totalorder %s97, %s99
      %p106 = scmp.eq.s32.totalorder %s26, 1
      %p107 = por %p105, %p106
      %p108 = scmp.ne.s32.totalorder %s99, %s100
      %p109 = scmp.eq.s32.totalorder %s26, 0
      %p110 = por %p108, %p109
      %p111 = scmp.ne.s32.totalorder %s99, %s100
      %p112 = scmp.eq.s32.totalorder %s27, 1
      %p113 = por %p111, %p112
      %p115 = scmp.ne.s32.totalorder %s100, %s114
      %p116 = scmp.eq.s32.totalorder %s27, 0
      %p117 = por %p115, %p116
      %s119 = sadd.s32 %s118, 1
      %p122 = scmp.eq.s32.totalorder %s21, 1
      %p123 = scmp.ne.s32.totalorder %s118, %s120
      %p124 = scmp.eq.s32.totalorder %s21, 0
      %p125 = por %p123, %p124
      %p126 = scmp.ne.s32.totalorder %s118, %s120
      %p127 = scmp.eq.s32.totalorder %s26, 1
      %p128 = por %p126, %p127
      %p129 = scmp.ne.s32.totalorder %s120, %s121
      %p130 = scmp.eq.s32.totalorder %s26, 0
      %p131 = por %p129, %p130
      %p132 = scmp.ne.s32.totalorder %s120, %s121
      %p133 = scmp.eq.s32.totalorder %s27, 1
      %p134 = por %p132, %p133
      %p136 = scmp.ne.s32.totalorder %s121, %s135
      %p137 = scmp.eq.s32.totalorder %s27, 0
      %p138 = por %p136, %p137
      %s140 = sadd.s32 %s139, 1
      %p143 = scmp.eq.s32.totalorder %s21, 1
      %p144 = scmp.ne.s32.totalorder %s139, %s141
      %p145 = scmp.eq.s32.totalorder %s21, 0
      %p146 = por %p144, %p145
      %p147 = scmp.ne.s32.totalorder %s139, %s141
      %p148 = scmp.eq.s32.totalorder %s26, 1
      %p149 = por %p147, %p148
      %p150 = scmp.ne.s32.totalorder %s141, %s142
      %p151 = scmp.eq.s32.totalorder %s26, 0
      %p152 = por %p150, %p151
      %p153 = scmp.ne.s32.totalorder %s141, %s142
      %p154 = scmp.eq.s32.totalorder %s27, 1
      %p155 = por %p153, %p154
      %p157 = scmp.ne.s32.totalorder %s142, %s156
      %p158 = scmp.eq.s32.totalorder %s27, 0
      %p159 = por %p157, %p158
      %s161 = sadd.s32 %s160, 1
      %p164 = scmp.eq.s32.totalorder %s21, 1
      %p165 = scmp.ne.s32.totalorder %s160, %s162
      %p166 = scmp.eq.s32.totalorder %s21, 0
      %p167 = por %p165, %p166
      %p168 = scmp.ne.s32.totalorder %s160, %s162
      %p169 = scmp.eq.s32.totalorder %s26, 1
      %p170 = por %p168, %p169
      %p171 = scmp.ne.s32.totalorder %s162, %s163
      %p172 = scmp.eq.s32.totalorder %s26, 0
      %p173 = por %p171, %p172
      %p174 = scmp.ne.s32.totalorder %s162, %s163
      %p175 = scmp.eq.s32.totalorder %s27, 1
      %p176 = por %p174, %p175
      %p178 = scmp.ne.s32.totalorder %s163, %s177
      %p179 = scmp.eq.s32.totalorder %s27, 0
      %p180 = por %p178, %p179
      %s181 = ssub.s32 %s21, %s28
      %p182 = scmp.eq.s32.totalorder %s181, 0
      %s184 = sadd.s32 %s183, 1
      %s185 = scalar_select %p182, %s183, %s184
      %p188 = pneg %p182
      %p189 = scmp.eq.s32.totalorder %s21, 1
      %p190 = por %p188, %p189
      %p191 = scmp.ne.s32.totalorder %s183, %s186
      %p192 = scmp.eq.s32.totalorder %s21, 0
      %p193 = por %p191, %p192
      %p194 = scmp.ne.s32.totalorder %s183, %s186
      %p195 = scmp.eq.s32.totalorder %s26, 1
      %p196 = por %p194, %p195
      %p197 = scmp.ne.s32.totalorder %s186, %s187
      %p198 = scmp.eq.s32.totalorder %s26, 0
      %p199 = por %p197, %p198
      %p200 = scmp.ne.s32.totalorder %s186, %s187
      %p201 = scmp.eq.s32.totalorder %s27, 1
      %p202 = por %p200, %p201
      %p204 = scmp.ne.s32.totalorder %s187, %s203
      %p205 = scmp.eq.s32.totalorder %s27, 0
      %p206 = por %p204, %p205
      %p207 = scmp.le.s32.totalorder 1, %s21
      %p208 = scmp.lt.s32.totalorder %s21, 3
      %p209 = pnand %p207, %p208
      %p210 = pneg %p209
      // Predicated region
      $region9: #{tpu_custom_call.1} parent=5 // pred_check
        _
      $region10: #{tpu_custom_call.1} parent=5 // pred_check_branch
        %212 = sbr.rel (%p209) target = $region12
      $region11: #{tpu_custom_call.1} parent=5 // pred_region
        %s213 = ssub.s32 %s21, 1
        // Predicated region
        $region13: #{tpu_custom_call.1} parent=11 // pred_check
          %p214 = pneg %p68
        $region14: #{tpu_custom_call.1} parent=11 // pred_check_branch
          %216 = sbr.rel (%p214) target = $region16
        $region15: #{tpu_custom_call.1} parent=11 // pred_region
          %s218 = ssub.s32 256, 256
          %219 = vsyncadd [#allocation6], %s218
          %s220 = sshll.u32 [#allocation5], 4
          %s221 = int_to_ptr.vmem [resolvable:$true] %s220
          %226 = dma.hbm_to_vmem [thread:$0]  %s1, 256, %s221, [#allocation6], 128, 128, 8
        $region16: #{tpu_custom_call.1} parent=11 // pred_fallthru
          _
        // Predicated region
        $region17: #{tpu_custom_call.1} parent=11 // pred_check
          %p227 = pneg %p89
        $region18: #{tpu_custom_call.1} parent=11 // pred_check_branch
          %229 = sbr.rel (%p227) target = $region20
        $region19: #{tpu_custom_call.1} parent=11 // pred_region
          _
        $region20: #{tpu_custom_call.1} parent=11 // pred_fallthru
          _
        // Predicated region
        $region21: #{tpu_custom_call.1} parent=11 // pred_check
          %p230 = pneg %p110
        $region22: #{tpu_custom_call.1} parent=11 // pred_check_branch
          %232 = sbr.rel (%p230) target = $region24
        $region23: #{tpu_custom_call.1} parent=11 // pred_region
          %s234 = ssub.s32 512, 512
          %235 = vsyncadd [#allocation6], %s234
          %s236 = sshll.u32 [#allocation7], 4
          %s237 = int_to_ptr.vmem [resolvable:$true] %s236
          %242 = dma.hbm_to_vmem [thread:$0]  %s3, 512, %s237, [#allocation6], 128, 128, 8
        $region24: #{tpu_custom_call.1} parent=11 // pred_fallthru
          _
        // Predicated region
        $region25: #{tpu_custom_call.1} parent=11 // pred_check
          %p243 = pneg %p131
        $region26: #{tpu_custom_call.1} parent=11 // pred_check_branch
          %245 = sbr.rel (%p243) target = $region28
        $region27: #{tpu_custom_call.1} parent=11 // pred_region
          _
        $region28: #{tpu_custom_call.1} parent=11 // pred_fallthru
          _
        // Predicated region
        $region29: #{tpu_custom_call.1} parent=11 // pred_check
          %p246 = pneg %p152
        $region30: #{tpu_custom_call.1} parent=11 // pred_check_branch
          %248 = sbr.rel (%p246) target = $region32
        $region31: #{tpu_custom_call.1} parent=11 // pred_region
          %s250 = ssub.s32 512, 512
          %251 = vsyncadd [#allocation9], %s250
          %s252 = sshll.u32 [#allocation8], 4
          %s253 = int_to_ptr.vmem [resolvable:$true] %s252
          %258 = dma.hbm_to_vmem [thread:$0]  %s5, 512, %s253, [#allocation9], 128, 128, 8
        $region32: #{tpu_custom_call.1} parent=11 // pred_fallthru
          _
        // Predicated region
        $region33: #{tpu_custom_call.1} parent=11 // pred_check
          %p259 = pneg %p173
        $region34: #{tpu_custom_call.1} parent=11 // pred_check_branch
          %261 = sbr.rel (%p259) target = $region36
        $region35: #{tpu_custom_call.1} parent=11 // pred_region
          _
        $region36: #{tpu_custom_call.1} parent=11 // pred_fallthru
          _
      $region12: #{tpu_custom_call.1} parent=5 // pred_fallthru
        _
      %p262 = scmp.lt.s32.totalorder %s21, 2
      // Predicated region
      $region37: #{tpu_custom_call.1} parent=5 // pred_check
        %p263 = pneg %p262
      $region38: #{tpu_custom_call.1} parent=5 // pred_check_branch
        %265 = sbr.rel (%p263) target = $region40
      $region39: #{tpu_custom_call.1} parent=5 // pred_region
        // Predicated region
        $region41: #{tpu_custom_call.1} parent=39 // pred_check
          %p266 = pneg %p41
        $region42: #{tpu_custom_call.1} parent=39 // pred_check_branch
          %268 = sbr.rel (%p266) target = $region44
        $region43: #{tpu_custom_call.1} parent=39 // pred_region
          %s269 = sand.u32 %s31, 1
          %s270 = scalar_lea.sflag [#allocation3], %s269
          %s271 = sand.u32 %s31, 1
          %s272 = smul.addr %s271, 8
          %s273 = scalar_lea.vmem [#allocation2], %s272
          %s275 = ssub.s32 128, 128
          %276 = vsyncadd %s270, %s275
          %s277 = smul.addr %s21, 128
          %s278 = scalar_lea.hbm %s0, %s277
          %s280 = sshll.u32 %s273, 4
          %s281 = int_to_ptr.vmem [resolvable:$true] %s280
          %283 = dma.hbm_to_vmem [thread:$0]  %s278, 128, %s281, %s270
        $region44: #{tpu_custom_call.1} parent=39 // pred_fallthru
          _
      $region40: #{tpu_custom_call.1} parent=5 // pred_fallthru
        _
      %p284 = scmp.le.s32.totalorder 1, %s21
      %p285 = scmp.lt.s32.totalorder %s21, 3
      %p286 = pnand %p284, %p285
      %p287 = pneg %p286
      // Predicated region
      $region45: #{tpu_custom_call.1} parent=5 // pred_check
        _
      $region46: #{tpu_custom_call.1} parent=5 // pred_check_branch
        %289 = sbr.rel (%p286) target = $region48
      $region47: #{tpu_custom_call.1} parent=5 // pred_region
        %s290 = ssub.s32 %s21, 1
        %s291 = sand.u32 %s34, 1
        %s292 = scalar_lea.sflag [#allocation3], %s291
        %s293 = sand.u32 %s34, 1
        %s294 = smul.addr %s293, 8
        %s295 = scalar_lea.vmem [#allocation2], %s294
        // Predicated region
        $region49: #{tpu_custom_call.1} parent=47 // pred_check
          %p296 = pneg %p47
        $region50: #{tpu_custom_call.1} parent=47 // pred_check_branch
          %298 = sbr.rel (%p296) target = $region52
        $region51: #{tpu_custom_call.1} parent=47 // pred_region
          %299 = dma.done %s292, 128
        $region52: #{tpu_custom_call.1} parent=47 // pred_fallthru
          _
        // Predicated region
        $region53: #{tpu_custom_call.1} parent=47 // pred_check
          %p300 = pneg %p68
        $region54: #{tpu_custom_call.1} parent=47 // pred_check_branch
          %302 = sbr.rel (%p300) target = $region56
        $region55: #{tpu_custom_call.1} parent=47 // pred_region
          %303 = dma.done [#allocation6], 256
        $region56: #{tpu_custom_call.1} parent=47 // pred_fallthru
          _
        // Predicated region
        $region57: #{tpu_custom_call.1} parent=47 // pred_check
          %p304 = pneg %p110
        $region58: #{tpu_custom_call.1} parent=47 // pred_check_branch
          %306 = sbr.rel (%p304) target = $region60
        $region59: #{tpu_custom_call.1} parent=47 // pred_region
          %307 = dma.done [#allocation6], 512
        $region60: #{tpu_custom_call.1} parent=47 // pred_fallthru
          _
        // Predicated region
        $region61: #{tpu_custom_call.1} parent=47 // pred_check
          %p308 = pneg %p152
        $region62: #{tpu_custom_call.1} parent=47 // pred_check_branch
          %310 = sbr.rel (%p308) target = $region64
        $region63: #{tpu_custom_call.1} parent=47 // pred_region
          %311 = dma.done [#allocation9], 512
        $region64: #{tpu_custom_call.1} parent=47 // pred_fallthru
          _
        %s312 = sand.u32 %s34, 1
        %s313 = scalar_lea.sflag [#allocation3], %s312
        %s314 = sand.u32 %s34, 1
        %s315 = smul.addr %s314, 8
        %s316 = scalar_lea.vmem [#allocation2], %s315
        %p317 = pneg %p47
        %p318 = pneg %p44
        %p319 = pneg %p68
        %p320 = pneg %p65
        %p321 = pneg %p89
        %p322 = pneg %p86
        %p323 = pneg %p110
        %p324 = pneg %p107
        %p325 = pneg %p131
        %p326 = pneg %p128
        %p327 = pneg %p152
        %p328 = pneg %p149
        %p329 = pneg %p173
        %p330 = pneg %p170
        %p331 = pneg %p199
        %p332 = pneg %p196
        %s333 = sand.u32 %s186, 1
        %s334 = scalar_lea.sflag [#allocation4], %s333
        %s335 = sand.u32 %s186, 1
        %s336 = smul.addr %s335, 8
        %s337 = scalar_lea.vmem [#allocation10], %s336
        %v338 = vld [vmem:[%s295] sm:$0xff]
        %v339 = vld [vmem:[#allocation5] sm:$0xff]
        %v340 = vld [vmem:[#allocation5 + $0x8] sm:$0xff]
        %v341 = vld [vmem:[%s2] sm:$0x7]
        %v342 = vlaneseq
        %v343 = vshrl.u32 %v342, 7
        %v344 = vsub.s32 0, %v343
        %v345 = vrot.slane %v341, %v344
        %vm346 = vcmask 130048
        %v348 = vsel %vm346, %v338, 0
        %350 = vmatprep.subr.mxu0 0.0
        %351 = vmatpush1.msra.mxu0 %v339
        %352 = vmatprep.subr.mxu0 0.0
        %353 = vmatpush1.msra.mxu0 %v340
        %354 = vmatprep.subr.mxu0 0.0
        %355 = vmatpush1.msra.mxu0 0.0
        %356 = vmatprep.subr.mxu0 0.0
        %357 = vmatpush1.msra.mxu0 0.0
        %358 = vmatprep.subr.mxu0 0.0
        %359 = vmatpush1.msra.mxu0 0.0
        %360 = vmatprep.subr.mxu0 0.0
        %361 = vmatpush1.msra.mxu0 0.0
        %362 = vmatprep.subr.mxu0 0.0
        %363 = vmatpush1.msra.mxu0 0.0
        %364 = vmatprep.subr.mxu0 0.0
        %365 = vmatpush1.msra.mxu0 0.0
        %366 = vmatprep.subr.mxu0 0.0
        %367 = vmatpush1.msra.mxu0 0.0
        %368 = vmatprep.subr.mxu0 0.0
        %369 = vmatpush1.msra.mxu0 0.0
        %370 = vmatprep.subr.mxu0 0.0
        %371 = vmatpush1.msra.mxu0 0.0
        %372 = vmatprep.subr.mxu0 0.0
        %373 = vmatpush1.msra.mxu0 0.0
        %374 = vmatprep.subr.mxu0 0.0
        %375 = vmatpush1.msra.mxu0 0.0
        %376 = vmatprep.subr.mxu0 0.0
        %377 = vmatpush1.msra.mxu0 0.0
        %378 = vmatprep.subr.mxu0 0.0
        %379 = vmatpush1.msra.mxu0 0.0
        %380 = vmatprep.subr.mxu0 0.0
        %381 = vmatpush1.msra.mxu0 0.0
        %382 = vmatprep.subr.mxu0 0.0
        %383 = vmatpush1.msra.mxu0 0.0
        %384 = vmatprep.subr.mxu0 0.0
        %385 = vmatpush1.msra.mxu0 0.0
        %386 = vmatprep.subr.mxu0 0.0
        %387 = vmatpush1.msra.mxu0 0.0
        %388 = vmatprep.subr.mxu0 0.0
        %389 = vmatpush1.msra.mxu0 0.0
        %390 = vmatprep.subr.mxu0 0.0
        %391 = vmatpush1.msra.mxu0 0.0
        %392 = vmatprep.subr.mxu0 0.0
        %393 = vmatpush1.msra.mxu0 0.0
        %394 = vmatprep.subr.mxu0 0.0
        %395 = vmatpush1.msra.mxu0 0.0
        %396 = vmatprep.subr.mxu0 0.0
        %397 = vmatpush1.msra.mxu0 0.0
        %398 = vmatprep.subr.mxu0 0.0
        %399 = vmatpush1.msra.mxu0 0.0
        %400 = vmatprep.subr.mxu0 0.0
        %401 = vmatpush1.msra.mxu0 0.0
        %402 = vmatprep.subr.mxu0 0.0
        %403 = vmatpush1.msra.mxu0 0.0
        %404 = vmatprep.subr.mxu0 0.0
        %405 = vmatpush1.msra.mxu0 0.0
        %406 = vmatprep.subr.mxu0 0.0
        %407 = vmatpush1.msra.mxu0 0.0
        %408 = vmatprep.subr.mxu0 0.0
        %409 = vmatpush1.msra.mxu0 0.0
        %410 = vmatprep.subr.mxu0 0.0
        %411 = vmatpush1.msra.mxu0 0.0
        %412 = vmatprep.subr.mxu0 0.0
        %413 = vmatpush1.msra.mxu0 0.0
        %414 = vmatprep.mubr.f32.mxu0 0.0
        %415 = vmatmul.mubr.f32.gmra.mrb[0].mxu0 %v348
        %v416 = vpop.f32.mrb[0].mxu0
        %v417 = vadd.f32 %v345, %v416
        %v418 = vpop.f32.mrb[0].mxu0
        %419 = vdwg.mxu0
        %vm420 = vcmask 261120
        %v421 = vsel %vm420, %v417, 0.0
        %422 = vadd.xlane.f32.xlu0 %v421
        %v423 = vpop.xlane.xlu0 %422
        %v424 = vrcp.pop 32.0
        %v425 = vmul.f32 %v423, %v424
        %v426 = vmul.f32 %v417, %v417
        %v427 = vsel %vm420, %v426, 0.0
        %428 = vadd.xlane.f32.xlu0 %v427
        %v429 = vpop.xlane.xlu0 %428
        %v430 = vmul.f32 %v429, %v424
        %v431 = vmul.f32 %v425, %v425
        %v432 = vsub.f32 %v430, %v431
        %v433 = vmax.f32 %v432, 0.0
        %v434 = vsub.f32 %v417, %v425
        %v435 = vadd.f32 %v433, 1e-05
        %v436 = vrsqrt.pop %v435
        %v437 = vmul.f32 %v434, %v436
        %v438 = vlaneseq
        %v439 = vshrl.u32 %v438, 7
        %v440 = vsub.s32 1, %v439
        %v441 = vrot.slane %v341, %v440
        %v442 = vmul.f32 %v437, %v441
        %v443 = vlaneseq
        %v444 = vshrl.u32 %v443, 7
        %v445 = vsub.s32 2, %v444
        %v446 = vrot.slane %v341, %v445
        %v447 = vadd.f32 %v442, %v446
        %v448 = vtanh.pop %v447
        %v449 = vld [vmem:[#allocation7] sm:$0xff]
        %v450 = vld [vmem:[#allocation7 + $0x8] sm:$0xff]
        %v451 = vld [vmem:[#allocation7 + $0x10] sm:$0xff]
        %v452 = vld [vmem:[#allocation7 + $0x18] sm:$0xff]
        %v453 = vld [vmem:[%s4] sm:$0x7]
        %v454 = vlaneseq
        %v455 = vshrl.u32 %v454, 7
        %v456 = vsub.s32 0, %v455
        %v457 = vrot.slane %v453, %v456
        %v459 = vsel %vm420, %v448, 0
        %461 = vmatprep.subr.mxu0 0.0
        %462 = vmatpush1.msra.mxu0 %v449
        %463 = vmatprep.subr.mxu0 0.0
        %464 = vmatpush1.msra.mxu0 %v450
        %465 = vmatprep.subr.mxu0 0.0
        %466 = vmatpush1.msra.mxu0 %v451
        %467 = vmatprep.subr.mxu0 0.0
        %468 = vmatpush1.msra.mxu0 %v452
        %469 = vmatprep.subr.mxu0 0.0
        %470 = vmatpush1.msra.mxu0 0.0
        %471 = vmatprep.subr.mxu0 0.0
        %472 = vmatpush1.msra.mxu0 0.0
        %473 = vmatprep.subr.mxu0 0.0
        %474 = vmatpush1.msra.mxu0 0.0
        %475 = vmatprep.subr.mxu0 0.0
        %476 = vmatpush1.msra.mxu0 0.0
        %477 = vmatprep.subr.mxu0 0.0
        %478 = vmatpush1.msra.mxu0 0.0
        %479 = vmatprep.subr.mxu0 0.0
        %480 = vmatpush1.msra.mxu0 0.0
        %481 = vmatprep.subr.mxu0 0.0
        %482 = vmatpush1.msra.mxu0 0.0
        %483 = vmatprep.subr.mxu0 0.0
        %484 = vmatpush1.msra.mxu0 0.0
        %485 = vmatprep.subr.mxu0 0.0
        %486 = vmatpush1.msra.mxu0 0.0
        %487 = vmatprep.subr.mxu0 0.0
        %488 = vmatpush1.msra.mxu0 0.0
        %489 = vmatprep.subr.mxu0 0.0
        %490 = vmatpush1.msra.mxu0 0.0
        %491 = vmatprep.subr.mxu0 0.0
        %492 = vmatpush1.msra.mxu0 0.0
        %493 = vmatprep.subr.mxu0 0.0
        %494 = vmatpush1.msra.mxu0 0.0
        %495 = vmatprep.subr.mxu0 0.0
        %496 = vmatpush1.msra.mxu0 0.0
        %497 = vmatprep.subr.mxu0 0.0
        %498 = vmatpush1.msra.mxu0 0.0
        %499 = vmatprep.subr.mxu0 0.0
        %500 = vmatpush1.msra.mxu0 0.0
        %501 = vmatprep.subr.mxu0 0.0
        %502 = vmatpush1.msra.mxu0 0.0
        %503 = vmatprep.subr.mxu0 0.0
        %504 = vmatpush1.msra.mxu0 0.0
        %505 = vmatprep.subr.mxu0 0.0
        %506 = vmatpush1.msra.mxu0 0.0
        %507 = vmatprep.subr.mxu0 0.0
        %508 = vmatpush1.msra.mxu0 0.0
        %509 = vmatprep.subr.mxu0 0.0
        %510 = vmatpush1.msra.mxu0 0.0
        %511 = vmatprep.subr.mxu0 0.0
        %512 = vmatpush1.msra.mxu0 0.0
        %513 = vmatprep.subr.mxu0 0.0
        %514 = vmatpush1.msra.mxu0 0.0
        %515 = vmatprep.subr.mxu0 0.0
        %516 = vmatpush1.msra.mxu0 0.0
        %517 = vmatprep.subr.mxu0 0.0
        %518 = vmatpush1.msra.mxu0 0.0
        %519 = vmatprep.subr.mxu0 0.0
        %520 = vmatpush1.msra.mxu0 0.0
        %521 = vmatprep.subr.mxu0 0.0
        %522 = vmatpush1.msra.mxu0 0.0
        %523 = vmatprep.subr.mxu0 0.0
        %524 = vmatpush1.msra.mxu0 0.0
        %525 = vmatprep.mubr.f32.mxu0 0.0
        %526 = vmatmul.mubr.f32.gmra.mrb[0].mxu0 %v459
        %v527 = vpop.f32.mrb[0].mxu0
        %v528 = vadd.f32 %v457, %v527
        %v529 = vpop.f32.mrb[0].mxu0
        %530 = vdwg.mxu0
        %v531 = vsel %vm420, %v528, 0.0
        %532 = vadd.xlane.f32.xlu0 %v531
        %v533 = vpop.xlane.xlu0 %532
        %v534 = vmul.f32 %v533, %v424
        %v535 = vmul.f32 %v528, %v528
        %v536 = vsel %vm420, %v535, 0.0
        %537 = vadd.xlane.f32.xlu0 %v536
        %v538 = vpop.xlane.xlu0 %537
        %v539 = vmul.f32 %v538, %v424
        %v540 = vmul.f32 %v534, %v534
        %v541 = vsub.f32 %v539, %v540
        %v542 = vmax.f32 %v541, 0.0
        %v543 = vsub.f32 %v528, %v534
        %v544 = vadd.f32 %v542, 1e-05
        %v545 = vrsqrt.pop %v544
        %v546 = vmul.f32 %v543, %v545
        %v547 = vlaneseq
        %v548 = vshrl.u32 %v547, 7
        %v549 = vsub.s32 1, %v548
        %v550 = vrot.slane %v453, %v549
        %v551 = vmul.f32 %v546, %v550
        %v552 = vlaneseq
        %v553 = vshrl.u32 %v552, 7
        %v554 = vsub.s32 2, %v553
        %v555 = vrot.slane %v453, %v554
        %v556 = vadd.f32 %v551, %v555
        %v557 = vtanh.pop %v556
        %v558 = vld [vmem:[#allocation8] sm:$0xff]
        %v559 = vld [vmem:[#allocation8 + $0x8] sm:$0xff]
        %v560 = vld [vmem:[#allocation8 + $0x10] sm:$0xff]
        %v561 = vld [vmem:[#allocation8 + $0x18] sm:$0xff]
        %v562 = vld [vmem:[%s6] sm:$0x1]
        %v564 = vlaneseq
        %v565 = vshrl.u32 %v564, 7
        %v566 = vsub.s32 0, %v565
        %v567 = vrot.slane %v562, %v566
        %v570 = vsel %vm420, %v557, 0
        %572 = vmatprep.subr.mxu0 0.0
        %573 = vmatpush1.msra.mxu0 %v558
        %574 = vmatprep.subr.mxu0 0.0
        %575 = vmatpush1.msra.mxu0 %v559
        %576 = vmatprep.subr.mxu0 0.0
        %577 = vmatpush1.msra.mxu0 %v560
        %578 = vmatprep.subr.mxu0 0.0
        %579 = vmatpush1.msra.mxu0 %v561
        %580 = vmatprep.subr.mxu0 0.0
        %581 = vmatpush1.msra.mxu0 0.0
        %582 = vmatprep.subr.mxu0 0.0
        %583 = vmatpush1.msra.mxu0 0.0
        %584 = vmatprep.subr.mxu0 0.0
        %585 = vmatpush1.msra.mxu0 0.0
        %586 = vmatprep.subr.mxu0 0.0
        %587 = vmatpush1.msra.mxu0 0.0
        %588 = vmatprep.subr.mxu0 0.0
        %589 = vmatpush1.msra.mxu0 0.0
        %590 = vmatprep.subr.mxu0 0.0
        %591 = vmatpush1.msra.mxu0 0.0
        %592 = vmatprep.subr.mxu0 0.0
        %593 = vmatpush1.msra.mxu0 0.0
        %594 = vmatprep.subr.mxu0 0.0
        %595 = vmatpush1.msra.mxu0 0.0
        %596 = vmatprep.subr.mxu0 0.0
        %597 = vmatpush1.msra.mxu0 0.0
        %598 = vmatprep.subr.mxu0 0.0
        %599 = vmatpush1.msra.mxu0 0.0
        %600 = vmatprep.subr.mxu0 0.0
        %601 = vmatpush1.msra.mxu0 0.0
        %602 = vmatprep.subr.mxu0 0.0
        %603 = vmatpush1.msra.mxu0 0.0
        %604 = vmatprep.subr.mxu0 0.0
        %605 = vmatpush1.msra.mxu0 0.0
        %606 = vmatprep.subr.mxu0 0.0
        %607 = vmatpush1.msra.mxu0 0.0
        %608 = vmatprep.subr.mxu0 0.0
        %609 = vmatpush1.msra.mxu0 0.0
        %610 = vmatprep.subr.mxu0 0.0
        %611 = vmatpush1.msra.mxu0 0.0
        %612 = vmatprep.subr.mxu0 0.0
        %613 = vmatpush1.msra.mxu0 0.0
        %614 = vmatprep.subr.mxu0 0.0
        %615 = vmatpush1.msra.mxu0 0.0
        %616 = vmatprep.subr.mxu0 0.0
        %617 = vmatpush1.msra.mxu0 0.0
        %618 = vmatprep.subr.mxu0 0.0
        %619 = vmatpush1.msra.mxu0 0.0
        %620 = vmatprep.subr.mxu0 0.0
        %621 = vmatpush1.msra.mxu0 0.0
        %622 = vmatprep.subr.mxu0 0.0
        %623 = vmatpush1.msra.mxu0 0.0
        %624 = vmatprep.subr.mxu0 0.0
        %625 = vmatpush1.msra.mxu0 0.0
        %626 = vmatprep.subr.mxu0 0.0
        %627 = vmatpush1.msra.mxu0 0.0
        %628 = vmatprep.subr.mxu0 0.0
        %629 = vmatpush1.msra.mxu0 0.0
        %630 = vmatprep.subr.mxu0 0.0
        %631 = vmatpush1.msra.mxu0 0.0
        %632 = vmatprep.subr.mxu0 0.0
        %633 = vmatpush1.msra.mxu0 0.0
        %634 = vmatprep.subr.mxu0 0.0
        %635 = vmatpush1.msra.mxu0 0.0
        %636 = vmatprep.mubr.f32.mxu0 0.0
        %637 = vmatmul.mubr.f32.gmra.mrb[0].mxu0 %v570
        %v638 = vpop.f32.mrb[0].mxu0
        %v639 = vadd.f32 %v567, %v638
        %v640 = vpop.f32.mrb[0].mxu0
        %641 = vdwg.mxu0
        %642 = vst [vmem:[%s337] sm:$0xff] %v639
        %s643 = sand.u32 %s186, 1
        %s644 = scalar_lea.sflag [#allocation4], %s643
        %s645 = sand.u32 %s186, 1
        %s646 = smul.addr %s645, 8
        %s647 = scalar_lea.vmem [#allocation10], %s646
        // Predicated region
        $region65: #{tpu_custom_call.1} parent=47 // pred_check
          %p648 = pneg %p196
        $region66: #{tpu_custom_call.1} parent=47 // pred_check_branch
          %650 = sbr.rel (%p648) target = $region68
        $region67: #{tpu_custom_call.1} parent=47 // pred_region
          %s652 = ssub.s32 128, 128
          %653 = vsyncadd %s644, %s652
          %s654 = smul.addr %s26, 128
          %s655 = scalar_lea.hbm %s7, %s654
          %s657 = sshll.u32 %s647, 4
          %s658 = int_to_ptr.vmem [resolvable:$true] %s657
          %660 = dma.vmem_to_hbm [thread:$0]  %s658, 128, %s655, %s644
        $region68: #{tpu_custom_call.1} parent=47 // pred_fallthru
          _
      $region48: #{tpu_custom_call.1} parent=5 // pred_fallthru
        _
      %p661 = scmp.le.s32.totalorder 2, %s21
      // Predicated region
      $region69: #{tpu_custom_call.1} parent=5 // pred_check
        %p662 = pneg %p661
      $region70: #{tpu_custom_call.1} parent=5 // pred_check_branch
        %664 = sbr.rel (%p662) target = $region72
      $region71: #{tpu_custom_call.1} parent=5 // pred_region
        %s665 = ssub.s32 %s21, 2
        // Predicated region
        $region73: #{tpu_custom_call.1} parent=71 // pred_check
          %p666 = pneg %p202
        $region74: #{tpu_custom_call.1} parent=71 // pred_check_branch
          %668 = sbr.rel (%p666) target = $region76
        $region75: #{tpu_custom_call.1} parent=71 // pred_region
          %s669 = sand.u32 %s187, 1
          %s670 = scalar_lea.sflag [#allocation4], %s669
          %s671 = sand.u32 %s187, 1
          %s672 = smul.addr %s671, 8
          %s673 = scalar_lea.vmem [#allocation10], %s672
          %674 = dma.done %s670, 128
        $region76: #{tpu_custom_call.1} parent=71 // pred_fallthru
          _
      $region72: #{tpu_custom_call.1} parent=5 // pred_fallthru
        _
    $region6: #{tpu_custom_call.1} parent=1 // loop_footer
      %s25 = sadd.s32 1, %s21
    $region7: #{tpu_custom_call.1} parent=1 // loop_footer_branch
      %20 = sbr.rel target = $region3
    $region8: #{tpu_custom_call.1} parent=1 // loop_exit
      _
    %675 = vsyncpa [#allocation3], 1
    %s676 = scalar_lea.sflag [#allocation3], 1
    %677 = vsyncpa %s676, 1
    %678 = vsyncpa [#allocation6], 1
    %679 = vsyncpa [#allocation9], 1
    %680 = vsyncpa [#allocation4], 1
    %s681 = scalar_lea.sflag [#allocation4], 1
    %682 = vsyncpa %s681, 1

</llo_original>
